<compile_context>
chip_gen: v6e
topology: v6e:2x2x1
jax: 0.10.0
libtpu: 0.0.40
codegen_flags: <defaults>
</compile_context>

<pallas_src>
import functools

import jax
import jax.numpy as jnp
from jax import lax
from jax.experimental import pallas as pl
from jax.experimental.pallas import tpu as pltpu


def _round_up(x, m):
    return ((x + m - 1) // m) * m


def _fused_mlp_kernel(*refs, n_layers, out_valid):
    """refs = (x_ref, w1, b1, w2, b2, ..., wn, bn, o_ref).

    Hidden layers: Linear -> ReLU (dropout = identity).
    Last layer:    Linear -> Sigmoid. The last-layer weights were pre-widened
    with a zero column at index 3 and zero-padded to a lane-dense width; the
    kernel masks column 3 and the padding columns to exactly 0.
    """
    x_ref = refs[0]
    o_ref = refs[-1]
    h = x_ref[...]
    for i in range(n_layers):
        w = refs[1 + 2 * i][...]          # bf16, VMEM-resident
        b = refs[2 + 2 * i][...]          # f32
        h = jnp.dot(h.astype(w.dtype), w, preferred_element_type=jnp.float32) + b
        if i < n_layers - 1:
            h = jnp.maximum(h, 0.0)        # ReLU (VPU)
        else:
            h = jax.nn.sigmoid(h)          # Sigmoid (EUP)
    # Zero column at index 3 == torch.cat([y[:, :3], zeros, y[:, 3:]], axis=1),
    # and zero the lane-padding columns (>= out_valid) added for dense stores.
    col = lax.broadcasted_iota(jnp.int32, h.shape, dimension=1)
    h = jnp.where((col == 3) | (col >= out_valid), 0.0, h)
    o_ref[...] = h.astype(o_ref.dtype)


def init_params(layer_dims, key):
    """Deterministic nn.Linear-style init: U(-1/sqrt(fan_in), 1/sqrt(fan_in)).

    Weights are stored [D_in, D_out] (pre-transposed from PyTorch's [out, in]);
    biases are [1, D_out] so they broadcast over the batch inside the kernel.
    """
    params = []
    for i in range(len(layer_dims) - 1):
        key, kw, kb = jax.random.split(key, 3)
        fan_in = layer_dims[i]
        bound = 1.0 / float(fan_in) ** 0.5
        w = jax.random.uniform(
            kw, (layer_dims[i], layer_dims[i + 1]), jnp.float32, -bound, bound
        )
        b = jax.random.uniform(
            kb, (1, layer_dims[i + 1]), jnp.float32, -bound, bound
        )
        params.append((w, b))
    return params


def fast_ann_forward(x, params, *, tm=4096):
    """Forward pass matching fast_ann.forward, fused into one pallas_call."""
    n, d_in = x.shape
    n_layers = len(params)

    # --- Fold the zero-column insertion into the last layer ----------------
    w_last, b_last = params[-1]
    d_out = w_last.shape[1]
    out_w = d_out + 1                      # logical output width (incl. zero col)
    out_pad = _round_up(out_w, 128)        # lane-dense store width

    w_last_p = jnp.concatenate(
        [w_last[:, :3], jnp.zeros((w_last.shape[0], 1), w_last.dtype), w_last[:, 3:]],
        axis=1,
    )
    b_last_p = jnp.concatenate(
        [b_last[:, :3], jnp.zeros((1, 1), b_last.dtype), b_last[:, 3:]], axis=1
    )
    # Zero-pad the last layer to `out_pad` columns -> dense (tm, 128k) stores.
    w_last_p = jnp.pad(w_last_p, ((0, 0), (0, out_pad - out_w)))
    b_last_p = jnp.pad(b_last_p, ((0, 0), (0, out_pad - out_w)))
    fused_params = list(params[:-1]) + [(w_last_p, b_last_p)]

    # --- bf16 operands (f32 accumulation; biases stay f32) -----------------
    x_in = x.astype(jnp.bfloat16)
    fused_params = [(w.astype(jnp.bfloat16), b.astype(jnp.float32))
                    for (w, b) in fused_params]

    widths = [int(w.shape[1]) for (w, _) in fused_params]
    max_width = max([d_in] + widths)
    param_bytes = sum(2 * int(w.size) + 4 * int(b.size) for (w, b) in fused_params)

    # --- Batch tile sizing --------------------------------------------------
    tm = int(tm)
    if tm >= n:
        tm = n                             # single full-array tile
    else:
        tm = max(16, (tm // 16) * 16)      # bf16-friendly sublane multiple

    # v7x: if the batch is large but would fit a single tile, split in two so
    # the second TensorCore gets work (no effect on v5e/v6e: 1 TC).
    if tm >= n and n >= 4096:
        tm = _round_up(pl.cdiv(n, 2), 16)

    # Keep the per-step working set well under v7x's 64 MiB physical VMEM.
    def _step_bytes(tm_):
        x_b = 2 * tm_ * d_in * 2                 # bf16 x tile, double-buffered
        o_b = 2 * tm_ * out_pad * 4              # f32 out tile, double-buffered
        act_b = 2 * tm_ * max_width * 4          # rough live-activation bound
        return x_b + o_b + act_b + param_bytes

    vmem_budget = 40 * 1024 * 1024
    while tm > 16 and _step_bytes(tm) > vmem_budget:
        tm = max(16, ((tm // 2) // 16) * 16)

    steps = pl.cdiv(n, tm)
    grid = (steps,)

    # --- BlockSpecs ----------------------------------------------------------
    # x / out tiles stream over the batch grid; weights & biases use a constant
    # index_map so they are loaded once and stay VMEM-resident for the sweep.
    if steps >= 3:
        # Extra latency hiding on the streaming input (cheap in VMEM); mainly
        # helps v5e's lower HBM bandwidth.
        x_spec = pl.BlockSpec((tm, d_in), lambda i: (i, 0),
                              pipeline_mode=pl.Buffered(3))
    else:
        x_spec = pl.BlockSpec((tm, d_in), lambda i: (i, 0))

    in_specs = [x_spec]
    flat_args = [x_in]
    for (w, b) in fused_params:
        in_specs.append(pl.BlockSpec(w.shape, lambda i: (0, 0)))
        in_specs.append(pl.BlockSpec(b.shape, lambda i: (0, 0)))
        flat_args.append(w)
        flat_args.append(b)
    out_specs = pl.BlockSpec((tm, out_pad), lambda i: (i, 0))

    flops = 2 * n * sum(int(w.shape[0]) * int(w.shape[1]) for (w, _) in fused_params)
    bytes_accessed = 2 * n * d_in + param_bytes + 4 * n * out_pad

    vmem_limit = int(min(64 * 1024 * 1024,
                         max(32 * 1024 * 1024, 2 * _step_bytes(tm))))

    kernel = functools.partial(_fused_mlp_kernel, n_layers=n_layers, out_valid=out_w)
    out_full = pl.pallas_call(
        kernel,
        out_shape=jax.ShapeDtypeStruct((n, out_pad), jnp.float32),
        grid=grid,
        in_specs=in_specs,
        out_specs=out_specs,
        compiler_params=pltpu.CompilerParams(
            dimension_semantics=("parallel",),
            vmem_limit_bytes=vmem_limit,
        ),
        cost_estimate=pl.CostEstimate(
            flops=int(flops),
            transcendentals=int(n * out_pad),
            bytes_accessed=int(bytes_accessed),
        ),
    )(*flat_args)
    # Drop the lane-padding columns (pure slice; stores in-kernel stay dense).
    return out_full[:, :out_w]


def fast_ann_reference(x, params):
    """Pure-JAX f32 reference for correctness checking."""
    h = x
    n_layers = len(params)
    for i, (w, b) in enumerate(params):
        h = h @ w + b
        if i == n_layers - 1:
            h = jax.nn.sigmoid(h)
        else:
            h = jnp.maximum(h, 0.0)
    # x.squeeze() in the torch module is a no-op for [N>1, D>1].
    zeros = jnp.zeros((h.shape[0], 1), h.dtype)
    return jnp.concatenate([h[:, :3], zeros, h[:, 3:]], axis=1)


if __name__ == "__main__":
    # Small MLP: input 32 -> 64 -> 64 -> 7 outputs (so final output has 8 cols).
    layer_dims = [32, 64, 64, 7]
    batch = 8

    key = jax.random.PRNGKey(0)
    key, kx = jax.random.split(key)
    x = jax.random.normal(kx, (batch, layer_dims[0]), jnp.float32)
    params = init_params(layer_dims, key)

    out = jax.block_until_ready(fast_ann_forward(x, params))
    ref = fast_ann_reference(x, params)

    assert out.shape == (batch, layer_dims[-1] + 1), out.shape
    # bf16 matmul operands (f32 accumulation) -> relaxed tolerance vs f32 ref.
    assert jnp.allclose(out, ref, atol=1e-2, rtol=1e-2), "mismatch vs reference"
    # Column 3 must be exactly zero (matches the torch concat of a zeros column).
    assert jnp.all(out[:, 3] == 0.0), "zero column not exact"

    print("KERNEL_OK")
</pallas_src>

<mosaic_0001>
module attributes {stable_mosaic.version = 11 : i64} {
  func.func @_fused_mlp_kernel(%arg0: i32, %arg1: memref<8x32xbf16, #tpu.memory_space<vmem>>, %arg2: memref<32x64xbf16, #tpu.memory_space<vmem>>, %arg3: memref<1x64xf32, #tpu.memory_space<vmem>>, %arg4: memref<64x64xbf16, #tpu.memory_space<vmem>>, %arg5: memref<1x64xf32, #tpu.memory_space<vmem>>, %arg6: memref<64x128xbf16, #tpu.memory_space<vmem>>, %arg7: memref<1x128xf32, #tpu.memory_space<vmem>>, %arg8: memref<8x128xf32, #tpu.memory_space<vmem>>) attributes {dimension_semantics = [#tpu.dimension_semantics<parallel>], iteration_bounds = array<i64: 1>, scalar_prefetch = 0 : i64, scratch_operands = 0 : i64, tpu.core_type = #tpu.core_type<tc>, window_params = [{transform_indices = @transform_0, window_bounds = array<i64: 8, 32>}, {pipeline_mode = #tpu.pipeline_mode<synchronous>, transform_indices = @transform_1, window_bounds = array<i64: 32, 64>}, {pipeline_mode = #tpu.pipeline_mode<synchronous>, transform_indices = @transform_2, window_bounds = array<i64: 1, 64>}, {pipeline_mode = #tpu.pipeline_mode<synchronous>, transform_indices = @transform_3, window_bounds = array<i64: 64, 64>}, {pipeline_mode = #tpu.pipeline_mode<synchronous>, transform_indices = @transform_4, window_bounds = array<i64: 1, 64>}, {pipeline_mode = #tpu.pipeline_mode<synchronous>, transform_indices = @transform_5, window_bounds = array<i64: 64, 128>}, {pipeline_mode = #tpu.pipeline_mode<synchronous>, transform_indices = @transform_6, window_bounds = array<i64: 1, 128>}, {transform_indices = @transform_7, window_bounds = array<i64: 8, 128>}]} {
    %c0 = arith.constant 0 : index
    %c0_0 = arith.constant 0 : index
    %0 = vector.load %arg1[%c0, %c0_0] : memref<8x32xbf16, #tpu.memory_space<vmem>>, vector<8x32xbf16>
    %c0_1 = arith.constant 0 : index
    %c0_2 = arith.constant 0 : index
    %1 = vector.load %arg2[%c0_1, %c0_2] : memref<32x64xbf16, #tpu.memory_space<vmem>>, vector<32x64xbf16>
    %c0_3 = arith.constant 0 : index
    %c0_4 = arith.constant 0 : index
    %2 = vector.load %arg3[%c0_3, %c0_4] : memref<1x64xf32, #tpu.memory_space<vmem>>, vector<1x64xf32>
    %cst = arith.constant dense<0.000000e+00> : vector<8x64xf32>
    %3 = tpu.matmul %0, %1, %cst {dimension_numbers = #tpu.dot_dimension_numbers<[1], [0], [0], [1], [0, 0, 1, 1], [], []>} : vector<8x32xbf16>, vector<32x64xbf16>, vector<8x64xf32> -> vector<8x64xf32>
    %4 = vector.broadcast %2 : vector<1x64xf32> to vector<8x64xf32>
    %5 = arith.addf %3, %4 : vector<8x64xf32>
    %cst_5 = arith.constant 0.000000e+00 : f32
    %6 = vector.broadcast %cst_5 : f32 to vector<8x64xf32>
    %7 = arith.maximumf %5, %6 : vector<8x64xf32>
    %c0_6 = arith.constant 0 : index
    %c0_7 = arith.constant 0 : index
    %8 = vector.load %arg4[%c0_6, %c0_7] : memref<64x64xbf16, #tpu.memory_space<vmem>>, vector<64x64xbf16>
    %c0_8 = arith.constant 0 : index
    %c0_9 = arith.constant 0 : index
    %9 = vector.load %arg5[%c0_8, %c0_9] : memref<1x64xf32, #tpu.memory_space<vmem>>, vector<1x64xf32>
    %10 = arith.truncf %7 : vector<8x64xf32> to vector<8x64xbf16>
    %cst_10 = arith.constant dense<0.000000e+00> : vector<8x64xf32>
    %11 = tpu.matmul %10, %8, %cst_10 {dimension_numbers = #tpu.dot_dimension_numbers<[1], [0], [0], [1], [0, 0, 1, 1], [], []>} : vector<8x64xbf16>, vector<64x64xbf16>, vector<8x64xf32> -> vector<8x64xf32>
    %12 = vector.broadcast %9 : vector<1x64xf32> to vector<8x64xf32>
    %13 = arith.addf %11, %12 : vector<8x64xf32>
    %cst_11 = arith.constant 0.000000e+00 : f32
    %14 = vector.broadcast %cst_11 : f32 to vector<8x64xf32>
    %15 = arith.maximumf %13, %14 : vector<8x64xf32>
    %c0_12 = arith.constant 0 : index
    %c0_13 = arith.constant 0 : index
    %16 = vector.load %arg6[%c0_12, %c0_13] : memref<64x128xbf16, #tpu.memory_space<vmem>>, vector<64x128xbf16>
    %c0_14 = arith.constant 0 : index
    %c0_15 = arith.constant 0 : index
    %17 = vector.load %arg7[%c0_14, %c0_15] : memref<1x128xf32, #tpu.memory_space<vmem>>, vector<1x128xf32>
    %18 = arith.truncf %15 : vector<8x64xf32> to vector<8x64xbf16>
    %cst_16 = arith.constant dense<0.000000e+00> : vector<8x128xf32>
    %19 = tpu.matmul %18, %16, %cst_16 {dimension_numbers = #tpu.dot_dimension_numbers<[1], [0], [0], [1], [0, 0, 1, 1], [], []>} : vector<8x64xbf16>, vector<64x128xbf16>, vector<8x128xf32> -> vector<8x128xf32>
    %20 = vector.broadcast %17 : vector<1x128xf32> to vector<8x128xf32>
    %21 = arith.addf %19, %20 : vector<8x128xf32>
    %22 = arith.negf %21 : vector<8x128xf32>
    %23 = math.exp %22 : vector<8x128xf32>
    %cst_17 = arith.constant 1.000000e+00 : f32
    %24 = vector.broadcast %cst_17 : f32 to vector<8x128xf32>
    %25 = arith.addf %24, %23 : vector<8x128xf32>
    %26 = arith.divf %24, %25 : vector<8x128xf32>
    %27 = tpu.iota {dimensions = array<i32: 1>} : vector<8x128xi32>
    %c3_i32 = arith.constant 3 : i32
    %28 = vector.broadcast %c3_i32 : i32 to vector<8x128xi32>
    %29 = arith.cmpi eq, %27, %28 : vector<8x128xi32>
    %c8_i32 = arith.constant 8 : i32
    %30 = vector.broadcast %c8_i32 : i32 to vector<8x128xi32>
    %31 = arith.cmpi sge, %27, %30 : vector<8x128xi32>
    %32 = arith.ori %29, %31 : vector<8x128xi1>
    %cst_18 = arith.constant 0.000000e+00 : f32
    %33 = vector.broadcast %cst_18 : f32 to vector<8x128xf32>
    %34 = arith.select %32, %33, %26 : vector<8x128xi1>, vector<8x128xf32>
    %c0_19 = arith.constant 0 : index
    %c0_20 = arith.constant 0 : index
    %35 = vector.load %arg8[%c0_19, %c0_20] : memref<8x128xf32, #tpu.memory_space<vmem>>, vector<8x128xf32>
    tpu.vector_store %arg8[%c0_19, %c0_20], %34 {strides = array<i32>} : memref<8x128xf32, #tpu.memory_space<vmem>>, vector<8x128xf32>,
    return
  }
  func.func @transform_0(%arg0: i32) -> (i32, i32) {
    %c0_i32 = arith.constant 0 : i32
    %c0_i32_0 = arith.constant 0 : i32
    return %arg0, %c0_i32 : i32, i32
  }
  func.func @transform_1(%arg0: i32) -> (i32, i32) {
    %c0_i32 = arith.constant 0 : i32
    %c0_i32_0 = arith.constant 0 : i32
    %c0_i32_1 = arith.constant 0 : i32
    return %c0_i32, %c0_i32_0 : i32, i32
  }
  func.func @transform_2(%arg0: i32) -> (i32, i32) {
    %c0_i32 = arith.constant 0 : i32
    %c0_i32_0 = arith.constant 0 : i32
    %c0_i32_1 = arith.constant 0 : i32
    return %c0_i32, %c0_i32_0 : i32, i32
  }
  func.func @transform_3(%arg0: i32) -> (i32, i32) {
    %c0_i32 = arith.constant 0 : i32
    %c0_i32_0 = arith.constant 0 : i32
    %c0_i32_1 = arith.constant 0 : i32
    return %c0_i32, %c0_i32_0 : i32, i32
  }
  func.func @transform_4(%arg0: i32) -> (i32, i32) {
    %c0_i32 = arith.constant 0 : i32
    %c0_i32_0 = arith.constant 0 : i32
    %c0_i32_1 = arith.constant 0 : i32
    return %c0_i32, %c0_i32_0 : i32, i32
  }
  func.func @transform_5(%arg0: i32) -> (i32, i32) {
    %c0_i32 = arith.constant 0 : i32
    %c0_i32_0 = arith.constant 0 : i32
    %c0_i32_1 = arith.constant 0 : i32
    return %c0_i32, %c0_i32_0 : i32, i32
  }
  func.func @transform_6(%arg0: i32) -> (i32, i32) {
    %c0_i32 = arith.constant 0 : i32
    %c0_i32_0 = arith.constant 0 : i32
    %c0_i32_1 = arith.constant 0 : i32
    return %c0_i32, %c0_i32_0 : i32, i32
  }
  func.func @transform_7(%arg0: i32) -> (i32, i32) {
    %c0_i32 = arith.constant 0 : i32
    %c0_i32_0 = arith.constant 0 : i32
    return %arg0, %c0_i32 : i32, i32
  }
}

</mosaic_0001>

<llo_original>
// kernel: tpu_custom_call.1
$region0: #{tpu_custom_call.1}
  #allocation0 [shape = 'u32[]', space=smem, size = 0x4, offset = 0x4, fixed_abs, tag = 'smem constant byte address 0x4 - core index']
  #allocation1 [shape = 'u32[144,128]{1,0:T(1,128)}', space=vmem, size = 0x12000, scoped, tag = 'internal scratch']
  %s0 = inlined_call_operand.hbm [shape: bf16[8,32], index: 0, kind: input, shape index: {}]
  %s1 = inlined_call_operand.hbm [shape: bf16[32,64], index: 1, kind: input, shape index: {}]
  %s2 = inlined_call_operand.vmem [shape: f32[1,64], index: 2, kind: input, shape index: {}]
  %s3 = inlined_call_operand.hbm [shape: bf16[64,64], index: 3, kind: input, shape index: {}]
  %s4 = inlined_call_operand.vmem [shape: f32[1,64], index: 4, kind: input, shape index: {}]
  %s5 = inlined_call_operand.hbm [shape: bf16[64,128], index: 5, kind: input, shape index: {}]
  %s6 = inlined_call_operand.vmem [shape: f32[1,128], index: 6, kind: input, shape index: {}]
  %s7 = inlined_call_operand.hbm [shape: f32[8,128], index: 7, kind: output, shape index: {}]
  %s8 = sld [smem:[#allocation0]]
  $region54: #{tpu_custom_call.1} parent=0
    _
  %s10 = ssub.s32 1, %s8
  %s11 = scalar_select 0, %s10, %s8
  $region1: #{tpu_custom_call.1} parent=0
    #allocation2 [shape = 'u8[2048]{0}', space=vmem, size = 0x800, scoped, tag = 'input window, operand 0, single buffered']
    #allocation3 [shape = 's32[1]{0}', space=sflag, size = 0x4, scoped, tag = 'scoped memory for tpu_custom_call.1']
    #allocation4 [shape = 's32[1]{0}', space=sflag, size = 0x4, scoped, tag = 'scoped memory for tpu_custom_call.1']
    #allocation5 [shape = 'u8[8192]{0}', space=vmem, size = 0x2000, scoped, tag = 'input window, operand 1, single buffered']
    #allocation6 [shape = 's32[1]{0}', space=sflag, size = 0x4, scoped, tag = 'scoped memory for tpu_custom_call.1']
    #allocation7 [shape = 'u8[16384]{0}', space=vmem, size = 0x4000, scoped, tag = 'input window, operand 3, single buffered']
    #allocation8 [shape = 'u8[16384]{0}', space=vmem, size = 0x4000, scoped, tag = 'input window, operand 5, single buffered']
    #allocation9 [shape = 's32[1]{0}', space=sflag, size = 0x4, scoped, tag = 'scoped memory for tpu_custom_call.1']
    #allocation10 [shape = 'u8[4096]{0}', space=vmem, size = 0x1000, scoped, tag = 'output window, operand 0, single buffered']
    %12 = vsyncpa [#allocation3], 0
    %13 = vsyncpa [#allocation6], 0
    %14 = vsyncpa [#allocation9], 0
    %15 = vsyncpa [#allocation4], 0
    // Predicated region
    $region2: #{tpu_custom_call.1} parent=1 // pred_check
      _
    $region3: #{tpu_custom_call.1} parent=1 // pred_check_branch
      %17 = sbr.rel (0) target = $region5
    $region4: #{tpu_custom_call.1} parent=1 // pred_region
      %s19 = ssub.s32 64, 64
      %20 = vsyncadd [#allocation3], %s19
      %s22 = sshll.u32 [#allocation2], 4
      %s23 = int_to_ptr.vmem [resolvable:$true] %s22
      %25 = dma.hbm_to_vmem [thread:$0]  %s0, 64, %s23, [#allocation3]
    $region5: #{tpu_custom_call.1} parent=1 // pred_fallthru
      _
    // Predicated region
    $region6: #{tpu_custom_call.1} parent=1 // pred_check
      _
    $region7: #{tpu_custom_call.1} parent=1 // pred_check_branch
      %27 = sbr.rel (0) target = $region9
    $region8: #{tpu_custom_call.1} parent=1 // pred_region
      %s29 = ssub.s32 256, 256
      %30 = vsyncadd [#allocation6], %s29
      %s31 = sshll.u32 [#allocation5], 4
      %s32 = int_to_ptr.vmem [resolvable:$true] %s31
      %37 = dma.hbm_to_vmem [thread:$0]  %s1, 256, %s32, [#allocation6], 64, 64, 4
    $region9: #{tpu_custom_call.1} parent=1 // pred_fallthru
      _
    // Predicated region
    $region10: #{tpu_custom_call.1} parent=1 // pred_check
      _
    $region11: #{tpu_custom_call.1} parent=1 // pred_check_branch
      %39 = sbr.rel (0) target = $region13
    $region12: #{tpu_custom_call.1} parent=1 // pred_region
      _
    $region13: #{tpu_custom_call.1} parent=1 // pred_fallthru
      _
    // Predicated region
    $region14: #{tpu_custom_call.1} parent=1 // pred_check
      _
    $region15: #{tpu_custom_call.1} parent=1 // pred_check_branch
      %41 = sbr.rel (0) target = $region17
    $region16: #{tpu_custom_call.1} parent=1 // pred_region
      %s43 = ssub.s32 512, 512
      %44 = vsyncadd [#allocation6], %s43
      %s45 = sshll.u32 [#allocation7], 4
      %s46 = int_to_ptr.vmem [resolvable:$true] %s45
      %51 = dma.hbm_to_vmem [thread:$0]  %s3, 512, %s46, [#allocation6], 64, 64, 4
    $region17: #{tpu_custom_call.1} parent=1 // pred_fallthru
      _
    // Predicated region
    $region18: #{tpu_custom_call.1} parent=1 // pred_check
      _
    $region19: #{tpu_custom_call.1} parent=1 // pred_check_branch
      %53 = sbr.rel (0) target = $region21
    $region20: #{tpu_custom_call.1} parent=1 // pred_region
      _
    $region21: #{tpu_custom_call.1} parent=1 // pred_fallthru
      _
    // Predicated region
    $region22: #{tpu_custom_call.1} parent=1 // pred_check
      _
    $region23: #{tpu_custom_call.1} parent=1 // pred_check_branch
      %55 = sbr.rel (0) target = $region25
    $region24: #{tpu_custom_call.1} parent=1 // pred_region
      %s57 = ssub.s32 512, 512
      %58 = vsyncadd [#allocation9], %s57
      %s59 = sshll.u32 [#allocation8], 4
      %s60 = int_to_ptr.vmem [resolvable:$true] %s59
      %65 = dma.hbm_to_vmem [thread:$0]  %s5, 512, %s60, [#allocation9], 64, 64, 4
    $region25: #{tpu_custom_call.1} parent=1 // pred_fallthru
      _
    // Predicated region
    $region26: #{tpu_custom_call.1} parent=1 // pred_check
      _
    $region27: #{tpu_custom_call.1} parent=1 // pred_check_branch
      %67 = sbr.rel (0) target = $region29
    $region28: #{tpu_custom_call.1} parent=1 // pred_region
      _
    $region29: #{tpu_custom_call.1} parent=1 // pred_fallthru
      _
    // Predicated region
    $region30: #{tpu_custom_call.1} parent=1 // pred_check
      _
    $region31: #{tpu_custom_call.1} parent=1 // pred_check_branch
      %69 = sbr.rel (0) target = $region33
    $region32: #{tpu_custom_call.1} parent=1 // pred_region
      %70 = dma.done [#allocation3], 64
    $region33: #{tpu_custom_call.1} parent=1 // pred_fallthru
      _
    // Predicated region
    $region34: #{tpu_custom_call.1} parent=1 // pred_check
      _
    $region35: #{tpu_custom_call.1} parent=1 // pred_check_branch
      %72 = sbr.rel (0) target = $region37
    $region36: #{tpu_custom_call.1} parent=1 // pred_region
      %73 = dma.done [#allocation6], 256
    $region37: #{tpu_custom_call.1} parent=1 // pred_fallthru
      _
    // Predicated region
    $region38: #{tpu_custom_call.1} parent=1 // pred_check
      _
    $region39: #{tpu_custom_call.1} parent=1 // pred_check_branch
      %75 = sbr.rel (0) target = $region41
    $region40: #{tpu_custom_call.1} parent=1 // pred_region
      %76 = dma.done [#allocation6], 512
    $region41: #{tpu_custom_call.1} parent=1 // pred_fallthru
      _
    // Predicated region
    $region42: #{tpu_custom_call.1} parent=1 // pred_check
      _
    $region43: #{tpu_custom_call.1} parent=1 // pred_check_branch
      %78 = sbr.rel (0) target = $region45
    $region44: #{tpu_custom_call.1} parent=1 // pred_region
      %79 = dma.done [#allocation9], 512
    $region45: #{tpu_custom_call.1} parent=1 // pred_fallthru
      _
    %v81 = vld [vmem:[#allocation2] sm:$0xf]
    %v82 = vld [vmem:[#allocation5] sm:$0xf]
    %v83 = vld [vmem:[#allocation5 + $0x4] sm:$0xf]
    %v84 = vld [vmem:[#allocation5 + $0x8] sm:$0xf]
    %v85 = vld [vmem:[#allocation5 + $0xc] sm:$0xf]
    %v86 = vld [vmem:[%s2] sm:$0x1]
    %v88 = vlaneseq
    %v89 = vshrl.u32 %v88, 7
    %v90 = vsub.s32 0, %v89
    %v91 = vrot.slane %v86, %v90
    %v97 = vunpack.c.l.b16 %v82
    %v98 = vunpack.c.l.b16 %v83
    %v99 = vunpack.c.l.b16 %v84
    %v100 = vunpack.c.l.b16 %v85
    %v101 = vpack.c.b16 %v98, %v97
    %v102 = vpack.c.b16 %v100, %v99
    %vm105 = vcmask 261120
    %v107 = vsel %vm105, %v81, 0
    %109 = vmatprep.subr.bf16.mxu0 0
    %110 = vmatpush1.bf16.msra.mxu0 0
    %111 = vmatprep.subr.bf16.mxu0 0
    %112 = vmatpush1.bf16.msra.mxu0 0
    %113 = vmatprep.subr.bf16.mxu0 0
    %114 = vmatpush1.bf16.msra.mxu0 0
    %115 = vmatprep.subr.bf16.mxu0 0
    %116 = vmatpush1.bf16.msra.mxu0 0
    %117 = vmatprep.subr.bf16.mxu0 0
    %118 = vmatpush1.bf16.msra.mxu0 0
    %119 = vmatprep.subr.bf16.mxu0 0
    %120 = vmatpush1.bf16.msra.mxu0 0
    %121 = vmatprep.subr.bf16.mxu0 0
    %122 = vmatpush1.bf16.msra.mxu0 %v102
    %123 = vmatprep.subr.bf16.mxu0 0
    %124 = vmatpush1.bf16.msra.mxu0 %v101
    %125 = vmatprep.subr.bf16.mxu0 0
    %126 = vmatpush2.bf16.msra.mxu0 0
    %127 = vmatprep.subr.bf16.mxu0 0
    %128 = vmatpush2.bf16.msra.mxu0 0
    %129 = vmatprep.subr.bf16.mxu0 0
    %130 = vmatpush2.bf16.msra.mxu0 0
    %131 = vmatprep.subr.bf16.mxu0 0
    %132 = vmatpush2.bf16.msra.mxu0 0
    %133 = vmatprep.subr.bf16.mxu0 0
    %134 = vmatpush2.bf16.msra.mxu0 0
    %135 = vmatprep.subr.bf16.mxu0 0
    %136 = vmatpush2.bf16.msra.mxu0 0
    %137 = vmatprep.subr.bf16.mxu0 0
    %138 = vmatpush2.bf16.msra.mxu0 0
    %139 = vmatprep.subr.bf16.mxu0 0
    %140 = vmatpush2.bf16.msra.mxu0 0
    %141 = vmatprep.mubr.bf16.mxu0 0
    %142 = vmatmul.mubr.bf16.gmra.mxu0 %v107
    %v143 = vpop.f32.mrf.mxu0
    %v144 = vadd.f32 %v91, %v143
    %v145 = vpop.f32.mrf.mxu0
    %v146 = vpop.f32.mrf.mxu0
    %v147 = vpop.f32.mrf.mxu0
    %148 = vdwg.mxu0
    %v149 = vmax.f32 %v144, 0.0
    %v150 = vld [vmem:[#allocation7] sm:$0xf]
    %v151 = vld [vmem:[#allocation7 + $0x4] sm:$0xf]
    %v152 = vld [vmem:[#allocation7 + $0x8] sm:$0xf]
    %v153 = vld [vmem:[#allocation7 + $0xc] sm:$0xf]
    %v154 = vld [vmem:[#allocation7 + $0x10] sm:$0xf]
    %v155 = vld [vmem:[#allocation7 + $0x14] sm:$0xf]
    %v156 = vld [vmem:[#allocation7 + $0x18] sm:$0xf]
    %v157 = vld [vmem:[#allocation7 + $0x1c] sm:$0xf]
    %v158 = vld [vmem:[%s4] sm:$0x1]
    %v159 = vpack.c.bf16 %v149, %v149
    %v161 = vlaneseq
    %v162 = vshrl.u32 %v161, 7
    %v163 = vsub.s32 0, %v162
    %v164 = vrot.slane %v158, %v163
    %v174 = vunpack.c.l.b16 %v150
    %v175 = vunpack.c.l.b16 %v151
    %v176 = vunpack.c.l.b16 %v152
    %v177 = vunpack.c.l.b16 %v153
    %v178 = vunpack.c.l.b16 %v154
    %v179 = vunpack.c.l.b16 %v155
    %v180 = vunpack.c.l.b16 %v156
    %v181 = vunpack.c.l.b16 %v157
    %v182 = vpack.c.b16 %v175, %v174
    %v183 = vpack.c.b16 %v177, %v176
    %v184 = vpack.c.b16 %v179, %v178
    %v185 = vpack.c.b16 %v181, %v180
    %vm190 = vcmask 523264
    %v192 = vsel %vm190, %v159, 0
    %194 = vmatprep.subr.bf16.mxu0 0
    %195 = vmatpush1.bf16.msra.mxu0 0
    %196 = vmatprep.subr.bf16.mxu0 0
    %197 = vmatpush1.bf16.msra.mxu0 0
    %198 = vmatprep.subr.bf16.mxu0 0
    %199 = vmatpush1.bf16.msra.mxu0 0
    %200 = vmatprep.subr.bf16.mxu0 0
    %201 = vmatpush1.bf16.msra.mxu0 0
    %202 = vmatprep.subr.bf16.mxu0 0
    %203 = vmatpush1.bf16.msra.mxu0 %v185
    %204 = vmatprep.subr.bf16.mxu0 0
    %205 = vmatpush1.bf16.msra.mxu0 %v184
    %206 = vmatprep.subr.bf16.mxu0 0
    %207 = vmatpush1.bf16.msra.mxu0 %v183
    %208 = vmatprep.subr.bf16.mxu0 0
    %209 = vmatpush1.bf16.msra.mxu0 %v182
    %210 = vmatprep.subr.bf16.mxu0 0
    %211 = vmatpush2.bf16.msra.mxu0 0
    %212 = vmatprep.subr.bf16.mxu0 0
    %213 = vmatpush2.bf16.msra.mxu0 0
    %214 = vmatprep.subr.bf16.mxu0 0
    %215 = vmatpush2.bf16.msra.mxu0 0
    %216 = vmatprep.subr.bf16.mxu0 0
    %217 = vmatpush2.bf16.msra.mxu0 0
    %218 = vmatprep.subr.bf16.mxu0 0
    %219 = vmatpush2.bf16.msra.mxu0 0
    %220 = vmatprep.subr.bf16.mxu0 0
    %221 = vmatpush2.bf16.msra.mxu0 0
    %222 = vmatprep.subr.bf16.mxu0 0
    %223 = vmatpush2.bf16.msra.mxu0 0
    %224 = vmatprep.subr.bf16.mxu0 0
    %225 = vmatpush2.bf16.msra.mxu0 0
    %226 = vmatprep.mubr.bf16.mxu0 0
    %227 = vmatmul.mubr.bf16.gmra.mxu0 %v192
    %v228 = vpop.f32.mrf.mxu0
    %v229 = vadd.f32 %v164, %v228
    %v230 = vpop.f32.mrf.mxu0
    %v231 = vpop.f32.mrf.mxu0
    %v232 = vpop.f32.mrf.mxu0
    %233 = vdwg.mxu0
    %v234 = vmax.f32 %v229, 0.0
    %v235 = vld [vmem:[#allocation8] sm:$0xf]
    %v236 = vld [vmem:[#allocation8 + $0x4] sm:$0xf]
    %v237 = vld [vmem:[#allocation8 + $0x8] sm:$0xf]
    %v238 = vld [vmem:[#allocation8 + $0xc] sm:$0xf]
    %v239 = vld [vmem:[#allocation8 + $0x10] sm:$0xf]
    %v240 = vld [vmem:[#allocation8 + $0x14] sm:$0xf]
    %v241 = vld [vmem:[#allocation8 + $0x18] sm:$0xf]
    %v242 = vld [vmem:[#allocation8 + $0x1c] sm:$0xf]
    %v243 = vld [vmem:[%s6] sm:$0x1]
    %v244 = vpack.c.bf16 %v234, %v234
    %v246 = vlaneseq
    %v247 = vshrl.u32 %v246, 7
    %v248 = vsub.s32 0, %v247
    %v249 = vrot.slane %v243, %v248
    %v259 = vunpack.c.l.b16 %v235
    %v260 = vunpack.c.l.b16 %v236
    %v261 = vunpack.c.l.b16 %v237
    %v262 = vunpack.c.l.b16 %v238
    %v263 = vunpack.c.l.b16 %v239
    %v264 = vunpack.c.l.b16 %v240
    %v265 = vunpack.c.l.b16 %v241
    %v266 = vunpack.c.l.b16 %v242
    %v267 = vpack.c.b16 %v260, %v259
    %v268 = vpack.c.b16 %v262, %v261
    %v269 = vpack.c.b16 %v264, %v263
    %v270 = vpack.c.b16 %v266, %v265
    %v276 = vsel %vm190, %v244, 0
    %278 = vmatprep.subr.bf16.mxu0 0
    %279 = vmatpush1.bf16.msra.mxu0 0
    %280 = vmatprep.subr.bf16.mxu0 0
    %281 = vmatpush1.bf16.msra.mxu0 0
    %282 = vmatprep.subr.bf16.mxu0 0
    %283 = vmatpush1.bf16.msra.mxu0 0
    %284 = vmatprep.subr.bf16.mxu0 0
    %285 = vmatpush1.bf16.msra.mxu0 0
    %286 = vmatprep.subr.bf16.mxu0 0
    %287 = vmatpush1.bf16.msra.mxu0 %v270
    %288 = vmatprep.subr.bf16.mxu0 0
    %289 = vmatpush1.bf16.msra.mxu0 %v269
    %290 = vmatprep.subr.bf16.mxu0 0
    %291 = vmatpush1.bf16.msra.mxu0 %v268
    %292 = vmatprep.subr.bf16.mxu0 0
    %293 = vmatpush1.bf16.msra.mxu0 %v267
    %294 = vmatprep.subr.bf16.mxu0 0
    %295 = vmatpush2.bf16.msra.mxu0 0
    %296 = vmatprep.subr.bf16.mxu0 0
    %297 = vmatpush2.bf16.msra.mxu0 0
    %298 = vmatprep.subr.bf16.mxu0 0
    %299 = vmatpush2.bf16.msra.mxu0 0
    %300 = vmatprep.subr.bf16.mxu0 0
    %301 = vmatpush2.bf16.msra.mxu0 0
    %302 = vmatprep.subr.bf16.mxu0 0
    %303 = vmatpush2.bf16.msra.mxu0 0
    %304 = vmatprep.subr.bf16.mxu0 0
    %305 = vmatpush2.bf16.msra.mxu0 0
    %306 = vmatprep.subr.bf16.mxu0 0
    %307 = vmatpush2.bf16.msra.mxu0 0
    %308 = vmatprep.subr.bf16.mxu0 0
    %309 = vmatpush2.bf16.msra.mxu0 0
    %310 = vmatprep.mubr.bf16.mxu0 0
    %311 = vmatmul.mubr.bf16.gmra.mxu0 %v276
    %v312 = vpop.f32.mrf.mxu0
    %v313 = vadd.f32 %v249, %v312
    %v314 = vpop.f32.mrf.mxu0
    %v315 = vpop.f32.mrf.mxu0
    %v316 = vpop.f32.mrf.mxu0
    %317 = vdwg.mxu0
    %v318 = vxor.u32 %v313, 2147483648
    %v319 = vmul.f32 %v318, 1.442695
    %v320 = vpow.pop %v319
    %v321 = vadd.f32 %v320, 1.0
    %v322 = vrcp.pop %v321
    %v323 = vmul.f32 1.0, %v322
    %v324 = vlaneseq
    %v325 = vand.u32 %v324, 127
    %vm326 = vcmp.eq.s32.totalorder %v325, 3
    %vm327 = vcmp.ge.s32.totalorder %v325, 8
    %vm328 = vmor %vm326, %vm327
    %v329 = vsel %vm328, 0.0, %v323
    %330 = vst [vmem:[#allocation10] sm:$0xff] %v329
    // Predicated region
    $region46: #{tpu_custom_call.1} parent=1 // pred_check
      _
    $region47: #{tpu_custom_call.1} parent=1 // pred_check_branch
      %332 = sbr.rel (0) target = $region49
    $region48: #{tpu_custom_call.1} parent=1 // pred_region
      %s334 = ssub.s32 128, 128
      %335 = vsyncadd [#allocation4], %s334
      %s337 = sshll.u32 [#allocation10], 4
      %s338 = int_to_ptr.vmem [resolvable:$true] %s337
      %340 = dma.vmem_to_hbm [thread:$0]  %s338, 128, %s7, [#allocation4]
    $region49: #{tpu_custom_call.1} parent=1 // pred_fallthru
      _
    // Predicated region
    $region50: #{tpu_custom_call.1} parent=1 // pred_check
      _
    $region51: #{tpu_custom_call.1} parent=1 // pred_check_branch
      %342 = sbr.rel (0) target = $region53
    $region52: #{tpu_custom_call.1} parent=1 // pred_region
      %343 = dma.done [#allocation4], 128
    $region53: #{tpu_custom_call.1} parent=1 // pred_fallthru
      _
    %344 = vsyncpa [#allocation3], 1
    %345 = vsyncpa [#allocation6], 1
    %346 = vsyncpa [#allocation9], 1
    %347 = vsyncpa [#allocation4], 1

</llo_original>
